<compile_context>
chip_gen: v6e
topology: v6e:2x2x1
jax: 0.10.0
libtpu: 0.0.40
codegen_flags: <defaults>
</compile_context>

<pallas_src>
import jax
import jax.numpy as jnp
from jax.experimental import pallas as pl
from jax.experimental.pallas import tpu as pltpu


def _ae_kernel(x_ref, gwt_ref, bg_ref, hwt_ref, bh_ref, out_ref):
    """out = sigmoid( sigmoid(x @ Wg^T + bg) @ Wh^T + bh ).

    Weights arrive pre-transposed: gwt = Wg^T (N, k), hwt = Wh[:, :k]^T (k, N),
    so both dots are canonical (M,K) x (K,N) on the MXU, f32 accumulate.
    """
    z1 = jnp.dot(x_ref[...], gwt_ref[...], preferred_element_type=jnp.float32)
    lat = jax.nn.sigmoid(z1 + bg_ref[...])            # (TB, k) + (1, k)

    z2 = jnp.dot(lat, hwt_ref[...], preferred_element_type=jnp.float32)
    out_ref[...] = jax.nn.sigmoid(z2 + bh_ref[...])   # (TB, N) + (1, N)


def autoencoder_forward(x, g_weight, g_bias, h_weight, h_bias, beta=None, *, tile_b=4096):
    """Pallas forward pass mirroring AutoEncoder.forward.

    x:        (B, num_students) float32
    g_weight: (k, num_students)            -- torch nn.Linear weight layout
    g_bias:   (k,)
    h_weight: (num_students, k + extra)    -- torch nn.Linear weight layout
    h_bias:   (num_students,)
    beta:     optional python/host scalar (torch path: extra_latent_dim == 1)
    """
    x = jnp.asarray(x, jnp.float32)
    gw = jnp.asarray(g_weight, jnp.float32)               # (k, N)
    hw = jnp.asarray(h_weight, jnp.float32)               # (N, k + extra)
    bg = jnp.asarray(g_bias, jnp.float32).reshape(1, -1)   # (1, k)
    bh = jnp.asarray(h_bias, jnp.float32).reshape(1, -1)   # (1, N)

    B, N = x.shape
    k = gw.shape[0]
    extra = hw.shape[1] - k

    if beta is not None:
        # torch concatenates a single [[beta]] column -> decoder must have exactly
        # one extra input. Fold the constant beta-latent into the decoder bias.
        assert extra == 1, "beta path requires extra_latent_dim == 1"
        bh = bh + jnp.float32(beta) * hw[:, k].reshape(1, N)
        hw = hw[:, :k]
    else:
        assert extra == 0, "no-beta path requires extra_latent_dim == 0"

    # One-time (tiny) transposes so the kernel's dots are canonical (M,K)x(K,N);
    # avoids any per-grid-step relayout of the VMEM-resident weight tiles.
    gwt = gw.T            # (N, k)
    hwt = hw.T            # (k, N)

    # --- batch tiling: stream x/out tiles, keep weights & biases VMEM-resident ---
    if B <= tile_b:
        tb = B                               # single full-array block (any B legal)
    else:
        tb = tile_b                          # must be a multiple of 8 (sublanes)
        assert tb % 8 == 0
    grid = (pl.cdiv(B, tb),)                 # ragged tail handled by Pallas (no pad/slice)

    # VMEM budget: double-buffered x & out tiles + resident weights/biases + headroom.
    tile_bytes = tb * N * 4
    weight_bytes = (N * k + k * N + k + N) * 4
    needed = 4 * tile_bytes + 4 * weight_bytes + (2 << 20)
    vmem_limit = int(min(max(needed, 16 << 20), 60 << 20))

    cost = pl.CostEstimate(
        flops=4 * B * N * k,                  # two (B,N)x(N,k)-sized matmuls
        transcendentals=B * (N + k),          # sigmoids
        bytes_accessed=2 * B * N * 4 + weight_bytes,
    )

    return pl.pallas_call(
        _ae_kernel,
        out_shape=jax.ShapeDtypeStruct((B, N), jnp.float32),
        grid=grid,
        in_specs=[
            pl.BlockSpec((tb, N), lambda i: (i, 0)),   # x: streamed per batch tile
            pl.BlockSpec((N, k), lambda i: (0, 0)),    # g weight^T: resident across grid
            pl.BlockSpec((1, k), lambda i: (0, 0)),    # g bias
            pl.BlockSpec((k, N), lambda i: (0, 0)),    # h weight^T (beta column folded)
            pl.BlockSpec((1, N), lambda i: (0, 0)),    # h bias (+ folded beta term)
        ],
        out_specs=pl.BlockSpec((tb, N), lambda i: (i, 0)),
        compiler_params=pltpu.CompilerParams(
            dimension_semantics=("parallel",),          # megacore-shard batch tiles (v7x)
            vmem_limit_bytes=vmem_limit,
        ),
        cost_estimate=cost,
    )(x, gwt, bg, hwt, bh)


def _reference_forward(x, g_weight, g_bias, h_weight, h_bias, beta=None):
    lat = jax.nn.sigmoid(x @ g_weight.T + g_bias)
    if beta is not None:
        beta_col = jnp.full((x.shape[0], 1), beta, jnp.float32)
        lat = jnp.concatenate([lat, beta_col], axis=-1)
    return jax.nn.sigmoid(lat @ h_weight.T + h_bias)


def _init_linear(key, out_features, in_features):
    # deterministic init matching torch.nn.Linear's uniform(-1/sqrt(in), 1/sqrt(in))
    kw, kb = jax.random.split(key)
    bound = 1.0 / (in_features ** 0.5)
    w = jax.random.uniform(kw, (out_features, in_features), jnp.float32, -bound, bound)
    b = jax.random.uniform(kb, (out_features,), jnp.float32, -bound, bound)
    return w, b


if __name__ == "__main__":
    key = jax.random.PRNGKey(0)
    k_x, k_g, k_h, k_g2, k_h2, k_xb, k_xl = jax.random.split(key, 7)

    # ---- no-beta path: num_students=128, k=32, batch=8, extra_latent_dim=0 ----
    num_students, k_dim, batch = 128, 32, 8
    g_w, g_b = _init_linear(k_g, k_dim, num_students)
    h_w, h_b = _init_linear(k_h, num_students, k_dim)
    x = jax.random.uniform(k_x, (batch, num_students), jnp.float32)

    out = jax.block_until_ready(autoencoder_forward(x, g_w, g_b, h_w, h_b))
    ref = _reference_forward(x, g_w, g_b, h_w, h_b)
    assert out.shape == (batch, num_students)
    assert jnp.allclose(out, ref, atol=1e-5, rtol=1e-5)

    # ---- beta path: extra_latent_dim=1, batch=1 (torch's [[beta]] implies B=1) ----
    g_w2, g_b2 = _init_linear(k_g2, k_dim, num_students)
    h_w2, h_b2 = _init_linear(k_h2, num_students, k_dim + 1)
    xb = jax.random.uniform(k_xb, (1, num_students), jnp.float32)
    beta = 0.37

    out_b = jax.block_until_ready(autoencoder_forward(xb, g_w2, g_b2, h_w2, h_b2, beta=beta))
    ref_b = _reference_forward(xb, g_w2, g_b2, h_w2, h_b2, beta=beta)
    assert out_b.shape == (1, num_students)
    assert jnp.allclose(out_b, ref_b, atol=1e-5, rtol=1e-5)

    # ---- ragged batched path: B=1000 with tile_b=512 exercises the multi-step
    #      grid plus the clipped partial last block (no wrapper pad / slice). ----
    xl = jax.random.uniform(k_xl, (1000, num_students), jnp.float32)
    out_l = jax.block_until_ready(autoencoder_forward(xl, g_w, g_b, h_w, h_b, tile_b=512))
    ref_l = _reference_forward(xl, g_w, g_b, h_w, h_b)
    assert out_l.shape == (1000, num_students)
    assert jnp.allclose(out_l, ref_l, atol=1e-5, rtol=1e-5)

    # ---- default large-tile path: B=4096 runs as a single full block ----
    xm = jax.random.uniform(k_x, (4096, num_students), jnp.float32)
    out_m = jax.block_until_ready(autoencoder_forward(xm, g_w, g_b, h_w, h_b))
    ref_m = _reference_forward(xm, g_w, g_b, h_w, h_b)
    assert jnp.allclose(out_m, ref_m, atol=1e-5, rtol=1e-5)

    print("KERNEL_OK")
</pallas_src>

<mosaic_0001>
module attributes {stable_mosaic.version = 11 : i64} {
  func.func @_ae_kernel(%arg0: i32, %arg1: memref<8x128xf32, #tpu.memory_space<vmem>>, %arg2: memref<128x32xf32, #tpu.memory_space<vmem>>, %arg3: memref<1x32xf32, #tpu.memory_space<vmem>>, %arg4: memref<32x128xf32, #tpu.memory_space<vmem>>, %arg5: memref<1x128xf32, #tpu.memory_space<vmem>>, %arg6: memref<8x128xf32, #tpu.memory_space<vmem>>) attributes {dimension_semantics = [#tpu.dimension_semantics<parallel>], iteration_bounds = array<i64: 1>, scalar_prefetch = 0 : i64, scratch_operands = 0 : i64, tpu.core_type = #tpu.core_type<tc>, window_params = [{transform_indices = @transform_0, window_bounds = array<i64: 8, 128>}, {pipeline_mode = #tpu.pipeline_mode<synchronous>, transform_indices = @transform_1, window_bounds = array<i64: 128, 32>}, {pipeline_mode = #tpu.pipeline_mode<synchronous>, transform_indices = @transform_2, window_bounds = array<i64: 1, 32>}, {pipeline_mode = #tpu.pipeline_mode<synchronous>, transform_indices = @transform_3, window_bounds = array<i64: 32, 128>}, {pipeline_mode = #tpu.pipeline_mode<synchronous>, transform_indices = @transform_4, window_bounds = array<i64: 1, 128>}, {transform_indices = @transform_5, window_bounds = array<i64: 8, 128>}]} {
    %c0 = arith.constant 0 : index
    %c0_0 = arith.constant 0 : index
    %0 = vector.load %arg1[%c0, %c0_0] : memref<8x128xf32, #tpu.memory_space<vmem>>, vector<8x128xf32>
    %c0_1 = arith.constant 0 : index
    %c0_2 = arith.constant 0 : index
    %1 = vector.load %arg2[%c0_1, %c0_2] : memref<128x32xf32, #tpu.memory_space<vmem>>, vector<128x32xf32>
    %cst = arith.constant dense<0.000000e+00> : vector<8x32xf32>
    %2 = tpu.matmul %0, %1, %cst {dimension_numbers = #tpu.dot_dimension_numbers<[1], [0], [0], [1], [0, 0, 1, 1], [], []>} : vector<8x128xf32>, vector<128x32xf32>, vector<8x32xf32> -> vector<8x32xf32>
    %c0_3 = arith.constant 0 : index
    %c0_4 = arith.constant 0 : index
    %3 = vector.load %arg3[%c0_3, %c0_4] : memref<1x32xf32, #tpu.memory_space<vmem>>, vector<1x32xf32>
    %4 = vector.broadcast %3 : vector<1x32xf32> to vector<8x32xf32>
    %5 = arith.addf %2, %4 : vector<8x32xf32>
    %6 = arith.negf %5 : vector<8x32xf32>
    %7 = math.exp %6 : vector<8x32xf32>
    %cst_5 = arith.constant 1.000000e+00 : f32
    %8 = vector.broadcast %cst_5 : f32 to vector<8x32xf32>
    %9 = arith.addf %8, %7 : vector<8x32xf32>
    %10 = arith.divf %8, %9 : vector<8x32xf32>
    %c0_6 = arith.constant 0 : index
    %c0_7 = arith.constant 0 : index
    %11 = vector.load %arg4[%c0_6, %c0_7] : memref<32x128xf32, #tpu.memory_space<vmem>>, vector<32x128xf32>
    %cst_8 = arith.constant dense<0.000000e+00> : vector<8x128xf32>
    %12 = tpu.matmul %10, %11, %cst_8 {dimension_numbers = #tpu.dot_dimension_numbers<[1], [0], [0], [1], [0, 0, 1, 1], [], []>} : vector<8x32xf32>, vector<32x128xf32>, vector<8x128xf32> -> vector<8x128xf32>
    %c0_9 = arith.constant 0 : index
    %c0_10 = arith.constant 0 : index
    %13 = vector.load %arg5[%c0_9, %c0_10] : memref<1x128xf32, #tpu.memory_space<vmem>>, vector<1x128xf32>
    %14 = vector.broadcast %13 : vector<1x128xf32> to vector<8x128xf32>
    %15 = arith.addf %12, %14 : vector<8x128xf32>
    %16 = arith.negf %15 : vector<8x128xf32>
    %17 = math.exp %16 : vector<8x128xf32>
    %cst_11 = arith.constant 1.000000e+00 : f32
    %18 = vector.broadcast %cst_11 : f32 to vector<8x128xf32>
    %19 = arith.addf %18, %17 : vector<8x128xf32>
    %20 = arith.divf %18, %19 : vector<8x128xf32>
    %c0_12 = arith.constant 0 : index
    %c0_13 = arith.constant 0 : index
    %21 = vector.load %arg6[%c0_12, %c0_13] : memref<8x128xf32, #tpu.memory_space<vmem>>, vector<8x128xf32>
    tpu.vector_store %arg6[%c0_12, %c0_13], %20 {strides = array<i32>} : memref<8x128xf32, #tpu.memory_space<vmem>>, vector<8x128xf32>,
    return
  }
  func.func @transform_0(%arg0: i32) -> (i32, i32) {
    %c0_i32 = arith.constant 0 : i32
    %c0_i32_0 = arith.constant 0 : i32
    return %arg0, %c0_i32 : i32, i32
  }
  func.func @transform_1(%arg0: i32) -> (i32, i32) {
    %c0_i32 = arith.constant 0 : i32
    %c0_i32_0 = arith.constant 0 : i32
    %c0_i32_1 = arith.constant 0 : i32
    return %c0_i32, %c0_i32_0 : i32, i32
  }
  func.func @transform_2(%arg0: i32) -> (i32, i32) {
    %c0_i32 = arith.constant 0 : i32
    %c0_i32_0 = arith.constant 0 : i32
    %c0_i32_1 = arith.constant 0 : i32
    return %c0_i32, %c0_i32_0 : i32, i32
  }
  func.func @transform_3(%arg0: i32) -> (i32, i32) {
    %c0_i32 = arith.constant 0 : i32
    %c0_i32_0 = arith.constant 0 : i32
    %c0_i32_1 = arith.constant 0 : i32
    return %c0_i32, %c0_i32_0 : i32, i32
  }
  func.func @transform_4(%arg0: i32) -> (i32, i32) {
    %c0_i32 = arith.constant 0 : i32
    %c0_i32_0 = arith.constant 0 : i32
    %c0_i32_1 = arith.constant 0 : i32
    return %c0_i32, %c0_i32_0 : i32, i32
  }
  func.func @transform_5(%arg0: i32) -> (i32, i32) {
    %c0_i32 = arith.constant 0 : i32
    %c0_i32_0 = arith.constant 0 : i32
    return %arg0, %c0_i32 : i32, i32
  }
}

</mosaic_0001>

<llo_original>
// kernel: tpu_custom_call.1
$region0: #{tpu_custom_call.1}
  #allocation0 [shape = 'u32[]', space=smem, size = 0x4, offset = 0x4, fixed_abs, tag = 'smem constant byte address 0x4 - core index']
  #allocation1 [shape = 'u32[144,128]{1,0:T(1,128)}', space=vmem, size = 0x12000, scoped, tag = 'internal scratch']
  %s0 = inlined_call_operand.vmem [shape: f32[8,128], index: 0, kind: input, shape index: {}]
  %s1 = inlined_call_operand.vmem [shape: f32[128,32], index: 1, kind: input, shape index: {}]
  %s2 = inlined_call_operand.vmem [shape: f32[1,32], index: 2, kind: input, shape index: {}]
  %s3 = inlined_call_operand.vmem [shape: f32[32,128], index: 3, kind: input, shape index: {}]
  %s4 = inlined_call_operand.vmem [shape: f32[1,128], index: 4, kind: input, shape index: {}]
  %s5 = inlined_call_operand.hbm [shape: f32[8,128], index: 5, kind: output, shape index: {}]
  %s6 = sld [smem:[#allocation0]]
  $region30: #{tpu_custom_call.1} parent=0
    _
  %s8 = ssub.s32 1, %s6
  %s9 = scalar_select 0, %s8, %s6
  $region1: #{tpu_custom_call.1} parent=0
    #allocation2 [shape = 'u8[4096]{0}', space=vmem, size = 0x1000, scoped, tag = 'output window, operand 0, single buffered']
    #allocation3 [shape = 's32[1]{0}', space=sflag, size = 0x4, scoped, tag = 'scoped memory for tpu_custom_call.1']
    %10 = vsyncpa [#allocation3], 0
    // Predicated region
    $region2: #{tpu_custom_call.1} parent=1 // pred_check
      _
    $region3: #{tpu_custom_call.1} parent=1 // pred_check_branch
      %12 = sbr.rel (0) target = $region5
    $region4: #{tpu_custom_call.1} parent=1 // pred_region
      _
    $region5: #{tpu_custom_call.1} parent=1 // pred_fallthru
      _
    // Predicated region
    $region6: #{tpu_custom_call.1} parent=1 // pred_check
      _
    $region7: #{tpu_custom_call.1} parent=1 // pred_check_branch
      %14 = sbr.rel (0) target = $region9
    $region8: #{tpu_custom_call.1} parent=1 // pred_region
      _
    $region9: #{tpu_custom_call.1} parent=1 // pred_fallthru
      _
    // Predicated region
    $region10: #{tpu_custom_call.1} parent=1 // pred_check
      _
    $region11: #{tpu_custom_call.1} parent=1 // pred_check_branch
      %16 = sbr.rel (0) target = $region13
    $region12: #{tpu_custom_call.1} parent=1 // pred_region
      _
    $region13: #{tpu_custom_call.1} parent=1 // pred_fallthru
      _
    // Predicated region
    $region14: #{tpu_custom_call.1} parent=1 // pred_check
      _
    $region15: #{tpu_custom_call.1} parent=1 // pred_check_branch
      %18 = sbr.rel (0) target = $region17
    $region16: #{tpu_custom_call.1} parent=1 // pred_region
      _
    $region17: #{tpu_custom_call.1} parent=1 // pred_fallthru
      _
    // Predicated region
    $region18: #{tpu_custom_call.1} parent=1 // pred_check
      _
    $region19: #{tpu_custom_call.1} parent=1 // pred_check_branch
      %20 = sbr.rel (0) target = $region21
    $region20: #{tpu_custom_call.1} parent=1 // pred_region
      _
    $region21: #{tpu_custom_call.1} parent=1 // pred_fallthru
      _
    %v21 = vld [vmem:[%s0] sm:$0xff]
    %v22 = vld [vmem:[%s1] sm:$0xff]
    %v23 = vld [vmem:[%s1 + $0x8] sm:$0xff]
    %v24 = vld [vmem:[%s1 + $0x10] sm:$0xff]
    %v25 = vld [vmem:[%s1 + $0x18] sm:$0xff]
    %v26 = vld [vmem:[%s1 + $0x20] sm:$0xff]
    %v27 = vld [vmem:[%s1 + $0x28] sm:$0xff]
    %v28 = vld [vmem:[%s1 + $0x30] sm:$0xff]
    %v29 = vld [vmem:[%s1 + $0x38] sm:$0xff]
    %v30 = vld [vmem:[%s1 + $0x40] sm:$0xff]
    %v31 = vld [vmem:[%s1 + $0x48] sm:$0xff]
    %v32 = vld [vmem:[%s1 + $0x50] sm:$0xff]
    %v33 = vld [vmem:[%s1 + $0x58] sm:$0xff]
    %v34 = vld [vmem:[%s1 + $0x60] sm:$0xff]
    %v35 = vld [vmem:[%s1 + $0x68] sm:$0xff]
    %v36 = vld [vmem:[%s1 + $0x70] sm:$0xff]
    %v37 = vld [vmem:[%s1 + $0x78] sm:$0xff]
    %v38 = vld [vmem:[%s2] sm:$0x1]
    %v40 = vlaneseq
    %v41 = vshrl.u32 %v40, 7
    %v42 = vsub.s32 0, %v41
    %v43 = vrot.slane %v38, %v42
    %45 = vmatprep.subr.mxu0 0.0
    %46 = vmatpush1.msra.mxu0 %v37
    %47 = vmatprep.subr.mxu0 0.0
    %48 = vmatpush1.msra.mxu0 %v36
    %49 = vmatprep.subr.mxu0 0.0
    %50 = vmatpush1.msra.mxu0 %v35
    %51 = vmatprep.subr.mxu0 0.0
    %52 = vmatpush1.msra.mxu0 %v34
    %53 = vmatprep.subr.mxu0 0.0
    %54 = vmatpush1.msra.mxu0 %v33
    %55 = vmatprep.subr.mxu0 0.0
    %56 = vmatpush1.msra.mxu0 %v32
    %57 = vmatprep.subr.mxu0 0.0
    %58 = vmatpush1.msra.mxu0 %v31
    %59 = vmatprep.subr.mxu0 0.0
    %60 = vmatpush1.msra.mxu0 %v30
    %61 = vmatprep.subr.mxu0 0.0
    %62 = vmatpush1.msra.mxu0 %v29
    %63 = vmatprep.subr.mxu0 0.0
    %64 = vmatpush1.msra.mxu0 %v28
    %65 = vmatprep.subr.mxu0 0.0
    %66 = vmatpush1.msra.mxu0 %v27
    %67 = vmatprep.subr.mxu0 0.0
    %68 = vmatpush1.msra.mxu0 %v26
    %69 = vmatprep.subr.mxu0 0.0
    %70 = vmatpush1.msra.mxu0 %v25
    %71 = vmatprep.subr.mxu0 0.0
    %72 = vmatpush1.msra.mxu0 %v24
    %73 = vmatprep.subr.mxu0 0.0
    %74 = vmatpush1.msra.mxu0 %v23
    %75 = vmatprep.subr.mxu0 0.0
    %76 = vmatpush1.msra.mxu0 %v22
    %77 = vmatprep.subr.mxu0 0.0
    %78 = vmatpush2.msra.mxu0 0.0
    %79 = vmatprep.subr.mxu0 0.0
    %80 = vmatpush2.msra.mxu0 0.0
    %81 = vmatprep.subr.mxu0 0.0
    %82 = vmatpush2.msra.mxu0 0.0
    %83 = vmatprep.subr.mxu0 0.0
    %84 = vmatpush2.msra.mxu0 0.0
    %85 = vmatprep.subr.mxu0 0.0
    %86 = vmatpush2.msra.mxu0 0.0
    %87 = vmatprep.subr.mxu0 0.0
    %88 = vmatpush2.msra.mxu0 0.0
    %89 = vmatprep.subr.mxu0 0.0
    %90 = vmatpush2.msra.mxu0 0.0
    %91 = vmatprep.subr.mxu0 0.0
    %92 = vmatpush2.msra.mxu0 0.0
    %93 = vmatprep.subr.mxu0 0.0
    %94 = vmatpush2.msra.mxu0 0.0
    %95 = vmatprep.subr.mxu0 0.0
    %96 = vmatpush2.msra.mxu0 0.0
    %97 = vmatprep.subr.mxu0 0.0
    %98 = vmatpush2.msra.mxu0 0.0
    %99 = vmatprep.subr.mxu0 0.0
    %100 = vmatpush2.msra.mxu0 0.0
    %101 = vmatprep.subr.mxu0 0.0
    %102 = vmatpush2.msra.mxu0 0.0
    %103 = vmatprep.subr.mxu0 0.0
    %104 = vmatpush2.msra.mxu0 0.0
    %105 = vmatprep.subr.mxu0 0.0
    %106 = vmatpush2.msra.mxu0 0.0
    %107 = vmatprep.subr.mxu0 0.0
    %108 = vmatpush2.msra.mxu0 0.0
    %109 = vmatprep.mubr.f32.mxu0 0.0
    %110 = vmatmul.mubr.f32.gmra.mxu0 %v21
    %v111 = vpop.f32.mrf.mxu0
    %v112 = vadd.f32 %v43, %v111
    %v113 = vpop.f32.mrf.mxu0
    %114 = vdwg.mxu0
    %v115 = vxor.u32 %v112, 2147483648
    %v116 = vmul.f32 %v115, 1.442695
    %v117 = vpow.pop %v116
    %v118 = vadd.f32 %v117, 1.0
    %v119 = vrcp.pop %v118
    %v120 = vmul.f32 1.0, %v119
    %v121 = vld [vmem:[%s3] sm:$0xff]
    %v122 = vld [vmem:[%s3 + $0x8] sm:$0xff]
    %v123 = vld [vmem:[%s3 + $0x10] sm:$0xff]
    %v124 = vld [vmem:[%s3 + $0x18] sm:$0xff]
    %v125 = vld [vmem:[%s4] sm:$0x1]
    %v127 = vlaneseq
    %v128 = vshrl.u32 %v127, 7
    %v129 = vsub.s32 0, %v128
    %v130 = vrot.slane %v125, %v129
    %vm132 = vcmask 261120
    %v134 = vsel %vm132, %v120, 0
    %136 = vmatprep.subr.mxu0 0.0
    %137 = vmatpush1.msra.mxu0 0.0
    %138 = vmatprep.subr.mxu0 0.0
    %139 = vmatpush1.msra.mxu0 0.0
    %140 = vmatprep.subr.mxu0 0.0
    %141 = vmatpush1.msra.mxu0 0.0
    %142 = vmatprep.subr.mxu0 0.0
    %143 = vmatpush1.msra.mxu0 0.0
    %144 = vmatprep.subr.mxu0 0.0
    %145 = vmatpush1.msra.mxu0 0.0
    %146 = vmatprep.subr.mxu0 0.0
    %147 = vmatpush1.msra.mxu0 0.0
    %148 = vmatprep.subr.mxu0 0.0
    %149 = vmatpush1.msra.mxu0 0.0
    %150 = vmatprep.subr.mxu0 0.0
    %151 = vmatpush1.msra.mxu0 0.0
    %152 = vmatprep.subr.mxu0 0.0
    %153 = vmatpush1.msra.mxu0 0.0
    %154 = vmatprep.subr.mxu0 0.0
    %155 = vmatpush1.msra.mxu0 0.0
    %156 = vmatprep.subr.mxu0 0.0
    %157 = vmatpush1.msra.mxu0 0.0
    %158 = vmatprep.subr.mxu0 0.0
    %159 = vmatpush1.msra.mxu0 0.0
    %160 = vmatprep.subr.mxu0 0.0
    %161 = vmatpush1.msra.mxu0 %v124
    %162 = vmatprep.subr.mxu0 0.0
    %163 = vmatpush1.msra.mxu0 %v123
    %164 = vmatprep.subr.mxu0 0.0
    %165 = vmatpush1.msra.mxu0 %v122
    %166 = vmatprep.subr.mxu0 0.0
    %167 = vmatpush1.msra.mxu0 %v121
    %168 = vmatprep.subr.mxu0 0.0
    %169 = vmatpush2.msra.mxu0 0.0
    %170 = vmatprep.subr.mxu0 0.0
    %171 = vmatpush2.msra.mxu0 0.0
    %172 = vmatprep.subr.mxu0 0.0
    %173 = vmatpush2.msra.mxu0 0.0
    %174 = vmatprep.subr.mxu0 0.0
    %175 = vmatpush2.msra.mxu0 0.0
    %176 = vmatprep.subr.mxu0 0.0
    %177 = vmatpush2.msra.mxu0 0.0
    %178 = vmatprep.subr.mxu0 0.0
    %179 = vmatpush2.msra.mxu0 0.0
    %180 = vmatprep.subr.mxu0 0.0
    %181 = vmatpush2.msra.mxu0 0.0
    %182 = vmatprep.subr.mxu0 0.0
    %183 = vmatpush2.msra.mxu0 0.0
    %184 = vmatprep.subr.mxu0 0.0
    %185 = vmatpush2.msra.mxu0 0.0
    %186 = vmatprep.subr.mxu0 0.0
    %187 = vmatpush2.msra.mxu0 0.0
    %188 = vmatprep.subr.mxu0 0.0
    %189 = vmatpush2.msra.mxu0 0.0
    %190 = vmatprep.subr.mxu0 0.0
    %191 = vmatpush2.msra.mxu0 0.0
    %192 = vmatprep.subr.mxu0 0.0
    %193 = vmatpush2.msra.mxu0 0.0
    %194 = vmatprep.subr.mxu0 0.0
    %195 = vmatpush2.msra.mxu0 0.0
    %196 = vmatprep.subr.mxu0 0.0
    %197 = vmatpush2.msra.mxu0 0.0
    %198 = vmatprep.subr.mxu0 0.0
    %199 = vmatpush2.msra.mxu0 0.0
    %200 = vmatprep.mubr.f32.mxu0 0.0
    %201 = vmatmul.mubr.f32.gmra.mxu0 %v134
    %v202 = vpop.f32.mrf.mxu0
    %v203 = vadd.f32 %v130, %v202
    %v204 = vpop.f32.mrf.mxu0
    %205 = vdwg.mxu0
    %v206 = vxor.u32 %v203, 2147483648
    %v207 = vmul.f32 %v206, 1.442695
    %v208 = vpow.pop %v207
    %v209 = vadd.f32 %v208, 1.0
    %v210 = vrcp.pop %v209
    %v211 = vmul.f32 1.0, %v210
    %212 = vst [vmem:[#allocation2] sm:$0xff] %v211
    // Predicated region
    $region22: #{tpu_custom_call.1} parent=1 // pred_check
      _
    $region23: #{tpu_custom_call.1} parent=1 // pred_check_branch
      %214 = sbr.rel (0) target = $region25
    $region24: #{tpu_custom_call.1} parent=1 // pred_region
      %s216 = ssub.s32 128, 128
      %217 = vsyncadd [#allocation3], %s216
      %s219 = sshll.u32 [#allocation2], 4
      %s220 = int_to_ptr.vmem [resolvable:$true] %s219
      %222 = dma.vmem_to_hbm [thread:$0]  %s220, 128, %s5, [#allocation3]
    $region25: #{tpu_custom_call.1} parent=1 // pred_fallthru
      _
    // Predicated region
    $region26: #{tpu_custom_call.1} parent=1 // pred_check
      _
    $region27: #{tpu_custom_call.1} parent=1 // pred_check_branch
      %224 = sbr.rel (0) target = $region29
    $region28: #{tpu_custom_call.1} parent=1 // pred_region
      %225 = dma.done [#allocation3], 128
    $region29: #{tpu_custom_call.1} parent=1 // pred_fallthru
      _
    %226 = vsyncpa [#allocation3], 1

</llo_original>
